<compile_context>
chip_gen: v6e
topology: v6e:2x2x1
jax: 0.10.0
libtpu: 0.0.40
codegen_flags: <defaults>
</compile_context>

<pallas_src>
import functools

import jax
import jax.numpy as jnp
from jax.experimental import pallas as pl
from jax.experimental.pallas import tpu as pltpu


def _round_up(x, m):
    return ((x + m - 1) // m) * m


def _rwl2_kernel(out_ref, lab_ref, w_ref, part_ref, *, eps, tm):
    # out_ref / lab_ref: (tm, D) row tiles, w_ref: (D, D) resident.
    o = out_ref[...]
    lab = lab_ref[...]
    diff = o - lab

    # Single fused MXU matmul for both quadratic forms:
    #   stacked = [diff; labels]  ->  (2*tm, D) @ (D, D)
    stacked = jnp.concatenate([diff, lab], axis=0)                      # (2*tm, D)
    sw = jnp.dot(stacked, w_ref[...], preferred_element_type=jnp.float32)

    # Per-row quadratic form: q[i] = sum_k (x @ W)[i,k] * x[i,k]
    q = jnp.sum(sw * stacked.astype(jnp.float32), axis=-1, keepdims=True)  # (2*tm, 1)
    q = jnp.maximum(q, 0.0)  # guard sqrt against tiny negative rounding for PSD W

    n_d = jnp.sqrt(q[:tm])                                              # (tm, 1)
    n_l = jnp.sqrt(q[tm:])                                              # (tm, 1)

    # Division on the (otherwise idle) EUP slot.
    ratio = n_d * pl.reciprocal(n_l + jnp.float32(eps), approx=True)    # (tm, 1)

    # Per-tile partial sum, written as a full aligned (8,128) block
    # (lane-dense unmasked store; independent per grid step -> parallel grid).
    partial = jnp.sum(ratio)
    part_ref[...] = jnp.broadcast_to(partial, (1, 8, 128)).astype(jnp.float32)


def relative_weighted_l2_loss(outputs, labels, weighted_matrix,
                              eps=1e-10, reduction="sum", tm=512):
    """Pallas implementation of RelativeWeightedL2Loss.forward (2-D inputs)."""
    if reduction not in ("sum", "mean"):
        raise NotImplementedError
    N, D = outputs.shape
    assert labels.shape == (N, D)
    assert weighted_matrix.shape == (D, D)

    # Row tile: as large as requested, multiple of 8, no larger than (padded) N.
    tm = int(max(8, _round_up(min(tm, N), 8)))
    n_pad = _round_up(N, tm)
    num_tiles = n_pad // tm

    # Zero-pad extra rows: diff=0 and labels=0 -> ratio = 0, contributes nothing.
    if n_pad != N:
        pad = ((0, n_pad - N), (0, 0))
        outputs = jnp.pad(outputs, pad)
        labels = jnp.pad(labels, pad)

    in_itemsize = jnp.dtype(outputs.dtype).itemsize
    w_itemsize = jnp.dtype(weighted_matrix.dtype).itemsize

    # VMEM budget: 2 inputs x 2 pipeline buffers x (tm, D) + resident W (x2 bufs)
    # + f32 temporaries (stacked / W-product / q).  Leave headroom.
    vmem_est = (2 * 2 * tm * D * in_itemsize
                + 2 * D * D * w_itemsize
                + 6 * tm * D * 4
                + 2 * 8 * 128 * 4)
    vmem_limit = int(min(120 * 2**20, max(32 * 2**20, 2 * vmem_est)))
    # TODO(synk): for very large D, tile W over a K grid axis instead of keeping
    # the whole (D, D) matrix resident (v7x has only 64 MiB of physical VMEM).

    cost = pl.CostEstimate(
        flops=2 * (2 * n_pad) * D * D + 6 * n_pad * D,
        transcendentals=3 * n_pad,
        bytes_accessed=2 * n_pad * D * in_itemsize
                       + D * D * w_itemsize
                       + num_tiles * 8 * 128 * 4,
    )

    kernel = functools.partial(_rwl2_kernel, eps=eps, tm=tm)

    partials = pl.pallas_call(
        kernel,
        out_shape=jax.ShapeDtypeStruct((num_tiles, 8, 128), jnp.float32),
        grid=(num_tiles,),
        in_specs=[
            pl.BlockSpec((tm, D), lambda i: (i, 0)),    # outputs row tile
            pl.BlockSpec((tm, D), lambda i: (i, 0)),    # labels row tile
            pl.BlockSpec((D, D), lambda i: (0, 0)),     # W resident every step
        ],
        out_specs=pl.BlockSpec((1, 8, 128), lambda i: (i, 0, 0)),
        compiler_params=pltpu.CompilerParams(
            dimension_semantics=("parallel",),
            vmem_limit_bytes=vmem_limit),
        cost_estimate=cost,
    )(outputs, labels, weighted_matrix)

    total = jnp.sum(partials[:, 0, 0])
    if reduction == "mean":
        return total / jnp.float32(N)
    return total


def _reference(outputs, labels, W, eps=1e-10, reduction="sum"):
    diff = outputs - labels
    nd = jnp.sqrt(jnp.einsum("ij,jk,ik->i", diff, W, diff))
    nl = jnp.sqrt(jnp.einsum("ij,jk,ik->i", labels, W, labels))
    loss = nd / (nl + eps)
    return jnp.sum(loss) if reduction == "sum" else jnp.mean(loss)


if __name__ == "__main__":
    key = jax.random.PRNGKey(0)
    k1, k2, k3 = jax.random.split(key, 3)

    D = 128
    # Deterministic symmetric PSD weight matrix so quadratic forms are >= 0.
    A = jax.random.normal(k3, (D, D), dtype=jnp.float32)
    W = (A @ A.T) / D + jnp.eye(D, dtype=jnp.float32)

    # Small primary case (single tile).
    N = 16
    outputs = jax.random.normal(k1, (N, D), dtype=jnp.float32)
    labels = jax.random.normal(k2, (N, D), dtype=jnp.float32)

    loss_sum = relative_weighted_l2_loss(outputs, labels, W, reduction="sum")
    loss_mean = relative_weighted_l2_loss(outputs, labels, W, reduction="mean")
    jax.block_until_ready((loss_sum, loss_mean))

    ref_sum = _reference(outputs, labels, W, reduction="sum")
    ref_mean = _reference(outputs, labels, W, reduction="mean")
    assert jnp.allclose(loss_sum, ref_sum, rtol=3e-3, atol=3e-3)
    assert jnp.allclose(loss_mean, ref_mean, rtol=3e-3, atol=3e-3)

    # Multi-tile + row-padding path (3 tiles of 16 rows, 8 padded rows).
    N2 = 40
    o2 = jax.random.normal(jax.random.PRNGKey(1), (N2, D), dtype=jnp.float32)
    l2 = jax.random.normal(jax.random.PRNGKey(2), (N2, D), dtype=jnp.float32)
    got = relative_weighted_l2_loss(o2, l2, W, reduction="mean", tm=16)
    jax.block_until_ready(got)
    assert jnp.allclose(got, _reference(o2, l2, W, reduction="mean"),
                        rtol=3e-3, atol=3e-3)

    print("KERNEL_OK")
</pallas_src>

<mosaic_0001>
module attributes {stable_mosaic.version = 11 : i64} {
  func.func @_rwl2_kernel(%arg0: i32, %arg1: memref<16x128xf32, #tpu.memory_space<vmem>>, %arg2: memref<16x128xf32, #tpu.memory_space<vmem>>, %arg3: memref<128x128xf32, #tpu.memory_space<vmem>>, %arg4: memref<1x8x128xf32, #tpu.memory_space<vmem>>) attributes {dimension_semantics = [#tpu.dimension_semantics<parallel>], iteration_bounds = array<i64: 1>, scalar_prefetch = 0 : i64, scratch_operands = 0 : i64, tpu.core_type = #tpu.core_type<tc>, window_params = [{transform_indices = @transform_0, window_bounds = array<i64: 16, 128>}, {transform_indices = @transform_1, window_bounds = array<i64: 16, 128>}, {pipeline_mode = #tpu.pipeline_mode<synchronous>, transform_indices = @transform_2, window_bounds = array<i64: 128, 128>}, {transform_indices = @transform_3, window_bounds = array<i64: 1, 8, 128>}]} {
    %c0 = arith.constant 0 : index
    %c0_0 = arith.constant 0 : index
    %0 = vector.load %arg1[%c0, %c0_0] : memref<16x128xf32, #tpu.memory_space<vmem>>, vector<16x128xf32>
    %c0_1 = arith.constant 0 : index
    %c0_2 = arith.constant 0 : index
    %1 = vector.load %arg2[%c0_1, %c0_2] : memref<16x128xf32, #tpu.memory_space<vmem>>, vector<16x128xf32>
    %2 = arith.subf %0, %1 : vector<16x128xf32>
    %3 = tpu.concatenate %2, %1 in 0 : vector<16x128xf32>, vector<16x128xf32> -> vector<32x128xf32>
    %c0_3 = arith.constant 0 : index
    %c0_4 = arith.constant 0 : index
    %4 = vector.load %arg3[%c0_3, %c0_4] : memref<128x128xf32, #tpu.memory_space<vmem>>, vector<128x128xf32>
    %cst = arith.constant dense<0.000000e+00> : vector<32x128xf32>
    %5 = tpu.matmul %3, %4, %cst {dimension_numbers = #tpu.dot_dimension_numbers<[1], [0], [0], [1], [0, 0, 1, 1], [], []>} : vector<32x128xf32>, vector<128x128xf32>, vector<32x128xf32> -> vector<32x128xf32>
    %6 = arith.mulf %5, %3 : vector<32x128xf32>
    %cst_5 = arith.constant dense<0.000000e+00> : vector<32xf32>
    %7 = vector.multi_reduction <add>, %6, %cst_5 [1] : vector<32x128xf32> to vector<32xf32>
    %8 = vector.shape_cast %7 : vector<32xf32> to vector<32x1xf32>
    %cst_6 = arith.constant 0.000000e+00 : f32
    %9 = vector.broadcast %cst_6 : f32 to vector<32x1xf32>
    %10 = arith.maximumf %8, %9 : vector<32x1xf32>
    %11 = vector.extract_strided_slice %10 {offsets = [0, 0], sizes = [16, 1], strides = [1, 1]} : vector<32x1xf32> to vector<16x1xf32>
    %12 = math.sqrt %11 : vector<16x1xf32>
    %13 = vector.extract_strided_slice %10 {offsets = [16, 0], sizes = [16, 1], strides = [1, 1]} : vector<32x1xf32> to vector<16x1xf32>
    %14 = math.sqrt %13 : vector<16x1xf32>
    %cst_7 = arith.constant 1.000000e-10 : f32
    %15 = vector.broadcast %cst_7 : f32 to vector<16x1xf32>
    %16 = arith.addf %14, %15 : vector<16x1xf32>
    %17 = tpu.reciprocal %16 {approx = true} : vector<16x1xf32> -> vector<16x1xf32>
    %18 = arith.mulf %12, %17 : vector<16x1xf32>
    %19 = vector.shape_cast %18 : vector<16x1xf32> to vector<1x16x1xf32>
    %cst_8 = arith.constant dense<0.000000e+00> : vector<1xf32>
    %20 = vector.multi_reduction <add>, %19, %cst_8 [1, 2] : vector<1x16x1xf32> to vector<1xf32>
    %21 = vector.shape_cast %20 : vector<1xf32> to vector<1x1x1xf32>
    %22 = vector.extract %21[0, 0, 0] : f32 from vector<1x1x1xf32>
    %23 = vector.broadcast %22 : f32 to vector<1x8x128xf32>
    %c0_9 = arith.constant 0 : index
    %c0_10 = arith.constant 0 : index
    %c0_11 = arith.constant 0 : index
    %24 = vector.load %arg4[%c0_9, %c0_10, %c0_11] : memref<1x8x128xf32, #tpu.memory_space<vmem>>, vector<1x8x128xf32>
    tpu.vector_store %arg4[%c0_9, %c0_10, %c0_11], %23 {strides = array<i32>} : memref<1x8x128xf32, #tpu.memory_space<vmem>>, vector<1x8x128xf32>,
    return
  }
  func.func @transform_0(%arg0: i32) -> (i32, i32) {
    %c0_i32 = arith.constant 0 : i32
    %c0_i32_0 = arith.constant 0 : i32
    return %arg0, %c0_i32 : i32, i32
  }
  func.func @transform_1(%arg0: i32) -> (i32, i32) {
    %c0_i32 = arith.constant 0 : i32
    %c0_i32_0 = arith.constant 0 : i32
    return %arg0, %c0_i32 : i32, i32
  }
  func.func @transform_2(%arg0: i32) -> (i32, i32) {
    %c0_i32 = arith.constant 0 : i32
    %c0_i32_0 = arith.constant 0 : i32
    %c0_i32_1 = arith.constant 0 : i32
    return %c0_i32, %c0_i32_0 : i32, i32
  }
  func.func @transform_3(%arg0: i32) -> (i32, i32, i32) {
    %c0_i32 = arith.constant 0 : i32
    %c0_i32_0 = arith.constant 0 : i32
    %c0_i32_1 = arith.constant 0 : i32
    return %arg0, %c0_i32, %c0_i32_0 : i32, i32, i32
  }
}

</mosaic_0001>

<llo_original>
// kernel: tpu_custom_call.1
$region0: #{tpu_custom_call.1}
  #allocation0 [shape = 'u32[]', space=smem, size = 0x4, offset = 0x4, fixed_abs, tag = 'smem constant byte address 0x4 - core index']
  #allocation1 [shape = 'u32[144,128]{1,0:T(1,128)}', space=vmem, size = 0x12000, scoped, tag = 'internal scratch']
  %s0 = inlined_call_operand.hbm [shape: f32[16,128], index: 0, kind: input, shape index: {}]
  %s1 = inlined_call_operand.hbm [shape: f32[16,128], index: 1, kind: input, shape index: {}]
  %s2 = inlined_call_operand.hbm [shape: f32[128,128], index: 2, kind: input, shape index: {}]
  %s3 = inlined_call_operand.hbm [shape: f32[1,8,128], index: 3, kind: output, shape index: {}]
  %s4 = sld [smem:[#allocation0]]
  $region34: #{tpu_custom_call.1} parent=0
    _
  %s6 = ssub.s32 1, %s4
  %s7 = scalar_select 0, %s6, %s4
  $region1: #{tpu_custom_call.1} parent=0
    #allocation2 [shape = 'u8[8192]{0}', space=vmem, size = 0x2000, scoped, tag = 'input window, operand 0, single buffered']
    #allocation3 [shape = 's32[1]{0}', space=sflag, size = 0x4, scoped, tag = 'scoped memory for tpu_custom_call.1']
    #allocation4 [shape = 's32[1]{0}', space=sflag, size = 0x4, scoped, tag = 'scoped memory for tpu_custom_call.1']
    #allocation5 [shape = 'u8[8192]{0}', space=vmem, size = 0x2000, scoped, tag = 'input window, operand 1, single buffered']
    #allocation6 [shape = 's32[1]{0}', space=sflag, size = 0x4, scoped, tag = 'scoped memory for tpu_custom_call.1']
    #allocation7 [shape = 'u8[65536]{0}', space=vmem, size = 0x10000, scoped, tag = 'input window, operand 2, single buffered']
    #allocation8 [shape = 'u8[4096]{0}', space=vmem, size = 0x1000, scoped, tag = 'output window, operand 0, single buffered']
    %8 = vsyncpa [#allocation3], 0
    %9 = vsyncpa [#allocation6], 0
    %10 = vsyncpa [#allocation4], 0
    // Predicated region
    $region2: #{tpu_custom_call.1} parent=1 // pred_check
      _
    $region3: #{tpu_custom_call.1} parent=1 // pred_check_branch
      %12 = sbr.rel (0) target = $region5
    $region4: #{tpu_custom_call.1} parent=1 // pred_region
      %s14 = ssub.s32 256, 256
      %15 = vsyncadd [#allocation3], %s14
      %s16 = sshll.u32 [#allocation2], 4
      %s17 = int_to_ptr.vmem [resolvable:$true] %s16
      %22 = dma.hbm_to_vmem [thread:$0]  %s0, 256, %s17, [#allocation3], 128, 128, 8
    $region5: #{tpu_custom_call.1} parent=1 // pred_fallthru
      _
    // Predicated region
    $region6: #{tpu_custom_call.1} parent=1 // pred_check
      _
    $region7: #{tpu_custom_call.1} parent=1 // pred_check_branch
      %24 = sbr.rel (0) target = $region9
    $region8: #{tpu_custom_call.1} parent=1 // pred_region
      %s26 = ssub.s32 256, 256
      %27 = vsyncadd [#allocation6], %s26
      %s28 = sshll.u32 [#allocation5], 4
      %s29 = int_to_ptr.vmem [resolvable:$true] %s28
      %34 = dma.hbm_to_vmem [thread:$0]  %s1, 256, %s29, [#allocation6], 128, 128, 8
    $region9: #{tpu_custom_call.1} parent=1 // pred_fallthru
      _
    // Predicated region
    $region10: #{tpu_custom_call.1} parent=1 // pred_check
      _
    $region11: #{tpu_custom_call.1} parent=1 // pred_check_branch
      %36 = sbr.rel (0) target = $region13
    $region12: #{tpu_custom_call.1} parent=1 // pred_region
      %s38 = ssub.s32 2048, 2048
      %39 = vsyncadd [#allocation6], %s38
      %s40 = sshll.u32 [#allocation7], 4
      %s41 = int_to_ptr.vmem [resolvable:$true] %s40
      %46 = dma.hbm_to_vmem [thread:$0]  %s2, 2048, %s41, [#allocation6], 128, 128, 8
    $region13: #{tpu_custom_call.1} parent=1 // pred_fallthru
      _
    // Predicated region
    $region14: #{tpu_custom_call.1} parent=1 // pred_check
      _
    $region15: #{tpu_custom_call.1} parent=1 // pred_check_branch
      %48 = sbr.rel (0) target = $region17
    $region16: #{tpu_custom_call.1} parent=1 // pred_region
      %49 = dma.done [#allocation3], 256
    $region17: #{tpu_custom_call.1} parent=1 // pred_fallthru
      _
    // Predicated region
    $region18: #{tpu_custom_call.1} parent=1 // pred_check
      _
    $region19: #{tpu_custom_call.1} parent=1 // pred_check_branch
      %51 = sbr.rel (0) target = $region21
    $region20: #{tpu_custom_call.1} parent=1 // pred_region
      %52 = dma.done [#allocation6], 256
    $region21: #{tpu_custom_call.1} parent=1 // pred_fallthru
      _
    // Predicated region
    $region22: #{tpu_custom_call.1} parent=1 // pred_check
      _
    $region23: #{tpu_custom_call.1} parent=1 // pred_check_branch
      %54 = sbr.rel (0) target = $region25
    $region24: #{tpu_custom_call.1} parent=1 // pred_region
      %55 = dma.done [#allocation6], 2048
    $region25: #{tpu_custom_call.1} parent=1 // pred_fallthru
      _
    %v56 = vld [vmem:[#allocation2] sm:$0xff]
    %v57 = vld [vmem:[#allocation2 + $0x8] sm:$0xff]
    %v58 = vld [vmem:[#allocation5] sm:$0xff]
    %v59 = vld [vmem:[#allocation5 + $0x8] sm:$0xff]
    %v60 = vsub.f32 %v56, %v58
    %v61 = vsub.f32 %v57, %v59
    %v62 = vld [vmem:[#allocation7] sm:$0xff]
    %v63 = vld [vmem:[#allocation7 + $0x8] sm:$0xff]
    %v64 = vld [vmem:[#allocation7 + $0x10] sm:$0xff]
    %v65 = vld [vmem:[#allocation7 + $0x18] sm:$0xff]
    %v66 = vld [vmem:[#allocation7 + $0x20] sm:$0xff]
    %v67 = vld [vmem:[#allocation7 + $0x28] sm:$0xff]
    %v68 = vld [vmem:[#allocation7 + $0x30] sm:$0xff]
    %v69 = vld [vmem:[#allocation7 + $0x38] sm:$0xff]
    %v70 = vld [vmem:[#allocation7 + $0x40] sm:$0xff]
    %v71 = vld [vmem:[#allocation7 + $0x48] sm:$0xff]
    %v72 = vld [vmem:[#allocation7 + $0x50] sm:$0xff]
    %v73 = vld [vmem:[#allocation7 + $0x58] sm:$0xff]
    %v74 = vld [vmem:[#allocation7 + $0x60] sm:$0xff]
    %v75 = vld [vmem:[#allocation7 + $0x68] sm:$0xff]
    %v76 = vld [vmem:[#allocation7 + $0x70] sm:$0xff]
    %v77 = vld [vmem:[#allocation7 + $0x78] sm:$0xff]
    %78 = vmatprep.subr.mxu0 0.0
    %79 = vmatpush1.msra.mxu0 %v77
    %80 = vmatprep.subr.mxu0 0.0
    %81 = vmatpush1.msra.mxu0 %v76
    %82 = vmatprep.subr.mxu0 0.0
    %83 = vmatpush1.msra.mxu0 %v75
    %84 = vmatprep.subr.mxu0 0.0
    %85 = vmatpush1.msra.mxu0 %v74
    %86 = vmatprep.subr.mxu0 0.0
    %87 = vmatpush1.msra.mxu0 %v73
    %88 = vmatprep.subr.mxu0 0.0
    %89 = vmatpush1.msra.mxu0 %v72
    %90 = vmatprep.subr.mxu0 0.0
    %91 = vmatpush1.msra.mxu0 %v71
    %92 = vmatprep.subr.mxu0 0.0
    %93 = vmatpush1.msra.mxu0 %v70
    %94 = vmatprep.subr.mxu0 0.0
    %95 = vmatpush1.msra.mxu0 %v69
    %96 = vmatprep.subr.mxu0 0.0
    %97 = vmatpush1.msra.mxu0 %v68
    %98 = vmatprep.subr.mxu0 0.0
    %99 = vmatpush1.msra.mxu0 %v67
    %100 = vmatprep.subr.mxu0 0.0
    %101 = vmatpush1.msra.mxu0 %v66
    %102 = vmatprep.subr.mxu0 0.0
    %103 = vmatpush1.msra.mxu0 %v65
    %104 = vmatprep.subr.mxu0 0.0
    %105 = vmatpush1.msra.mxu0 %v64
    %106 = vmatprep.subr.mxu0 0.0
    %107 = vmatpush1.msra.mxu0 %v63
    %108 = vmatprep.subr.mxu0 0.0
    %109 = vmatpush1.msra.mxu0 %v62
    %110 = vmatprep.subr.mxu0 0.0
    %111 = vmatpush2.msra.mxu0 0.0
    %112 = vmatprep.subr.mxu0 0.0
    %113 = vmatpush2.msra.mxu0 0.0
    %114 = vmatprep.subr.mxu0 0.0
    %115 = vmatpush2.msra.mxu0 0.0
    %116 = vmatprep.subr.mxu0 0.0
    %117 = vmatpush2.msra.mxu0 0.0
    %118 = vmatprep.subr.mxu0 0.0
    %119 = vmatpush2.msra.mxu0 0.0
    %120 = vmatprep.subr.mxu0 0.0
    %121 = vmatpush2.msra.mxu0 0.0
    %122 = vmatprep.subr.mxu0 0.0
    %123 = vmatpush2.msra.mxu0 0.0
    %124 = vmatprep.subr.mxu0 0.0
    %125 = vmatpush2.msra.mxu0 0.0
    %126 = vmatprep.subr.mxu0 0.0
    %127 = vmatpush2.msra.mxu0 0.0
    %128 = vmatprep.subr.mxu0 0.0
    %129 = vmatpush2.msra.mxu0 0.0
    %130 = vmatprep.subr.mxu0 0.0
    %131 = vmatpush2.msra.mxu0 0.0
    %132 = vmatprep.subr.mxu0 0.0
    %133 = vmatpush2.msra.mxu0 0.0
    %134 = vmatprep.subr.mxu0 0.0
    %135 = vmatpush2.msra.mxu0 0.0
    %136 = vmatprep.subr.mxu0 0.0
    %137 = vmatpush2.msra.mxu0 0.0
    %138 = vmatprep.subr.mxu0 0.0
    %139 = vmatpush2.msra.mxu0 0.0
    %140 = vmatprep.subr.mxu0 0.0
    %141 = vmatpush2.msra.mxu0 0.0
    %142 = vmatprep.mubr.f32.mxu0 0.0
    %143 = vmatmul.mubr.f32.gmra.mxu0 %v60
    %v144 = vpop.f32.mrf.mxu0
    %v145 = vadd.f32 0.0, %v144
    %v146 = vpop.f32.mrf.mxu0
    %147 = vmatprep.mubr.f32.mxu0 0.0
    %148 = vmatmul.mubr.f32.gmra.mxu0 %v61
    %v149 = vpop.f32.mrf.mxu0
    %v150 = vadd.f32 0.0, %v149
    %v151 = vpop.f32.mrf.mxu0
    %152 = vmatprep.mubr.f32.mxu0 0.0
    %153 = vmatmul.mubr.f32.gmra.mxu0 %v58
    %v154 = vpop.f32.mrf.mxu0
    %v155 = vadd.f32 0.0, %v154
    %v156 = vpop.f32.mrf.mxu0
    %157 = vmatprep.mubr.f32.mxu0 0.0
    %158 = vmatmul.mubr.f32.gmra.mxu0 %v59
    %v159 = vpop.f32.mrf.mxu0
    %v160 = vadd.f32 0.0, %v159
    %v161 = vpop.f32.mrf.mxu0
    %162 = vdwg.mxu0
    %v163 = vmul.f32 %v145, %v60
    %v164 = vmul.f32 %v150, %v61
    %v165 = vmul.f32 %v155, %v58
    %v166 = vmul.f32 %v160, %v59
    %167 = vadd.xlane.f32.xlu0 %v163
    %v168 = vpop.xlane.xlu0 %167
    %169 = vadd.xlane.f32.xlu0 %v164
    %v170 = vpop.xlane.xlu0 %169
    %171 = vadd.xlane.f32.xlu0 %v165
    %v172 = vpop.xlane.xlu0 %171
    %173 = vadd.xlane.f32.xlu0 %v166
    %v174 = vpop.xlane.xlu0 %173
    %v175 = vmax.f32 %v168, 0.0
    %v176 = vmax.f32 %v170, 0.0
    %v177 = vmax.f32 %v172, 0.0
    %v178 = vmax.f32 %v174, 0.0
    %v179 = vrsqrt.pop %v175
    %v180 = vmul.f32 %v175, %v179
    %vm181 = vcmp.eq.f32.partialorder %v175, inf
    %v182 = vsel %vm181, %v175, %v180
    %vm183 = vcmp.eq.f32.partialorder %v175, 0.0
    %v184 = vand.u32 %v175, 2147483648
    %v185 = vsel %vm183, %v184, %v182
    %v186 = vrsqrt.pop %v176
    %v187 = vmul.f32 %v176, %v186
    %vm188 = vcmp.eq.f32.partialorder %v176, inf
    %v189 = vsel %vm188, %v176, %v187
    %vm190 = vcmp.eq.f32.partialorder %v176, 0.0
    %v191 = vand.u32 %v176, 2147483648
    %v192 = vsel %vm190, %v191, %v189
    %v193 = vrsqrt.pop %v177
    %v194 = vmul.f32 %v177, %v193
    %vm195 = vcmp.eq.f32.partialorder %v177, inf
    %v196 = vsel %vm195, %v177, %v194
    %vm197 = vcmp.eq.f32.partialorder %v177, 0.0
    %v198 = vand.u32 %v177, 2147483648
    %v199 = vsel %vm197, %v198, %v196
    %v200 = vrsqrt.pop %v178
    %v201 = vmul.f32 %v178, %v200
    %vm202 = vcmp.eq.f32.partialorder %v178, inf
    %v203 = vsel %vm202, %v178, %v201
    %vm204 = vcmp.eq.f32.partialorder %v178, 0.0
    %v205 = vand.u32 %v178, 2147483648
    %v206 = vsel %vm204, %v205, %v203
    %v207 = vadd.f32 %v199, 1e-10
    %v208 = vadd.f32 %v206, 1e-10
    %v209 = vrcp.pop %v207
    %v210 = vrcp.pop %v208
    %v211 = vmul.f32 %v185, %v209
    %v212 = vmul.f32 %v192, %v210
    %vm213 = vcmask 7168
    %v214 = vsel %vm213, %v211, 0.0
    %v215 = vsel %vm213, %v212, 0.0
    %v216 = vadd.f32 %v214, %v215
    %217 = vadd.xlane.f32.xlu0 %v216
    %v218 = vpop.xlane.xlu0 %217
    %v219 = vrot.slane %v218, 4
    %v220 = vadd.f32 %v218, %v219
    %v221 = vrot.slane %v220, 2
    %v222 = vadd.f32 %v220, %v221
    %v223 = vrot.slane %v222, 1
    %v224 = vadd.f32 %v222, %v223
    %s225 = vtos %v224
    %v226 = vstv %s225
    %227 = vst [vmem:[#allocation8] sm:$0xff] %v226
    // Predicated region
    $region26: #{tpu_custom_call.1} parent=1 // pred_check
      _
    $region27: #{tpu_custom_call.1} parent=1 // pred_check_branch
      %229 = sbr.rel (0) target = $region29
    $region28: #{tpu_custom_call.1} parent=1 // pred_region
      %s231 = ssub.s32 128, 128
      %232 = vsyncadd [#allocation4], %s231
      %s234 = sshll.u32 [#allocation8], 4
      %s235 = int_to_ptr.vmem [resolvable:$true] %s234
      %237 = dma.vmem_to_hbm [thread:$0]  %s235, 128, %s3, [#allocation4]
    $region29: #{tpu_custom_call.1} parent=1 // pred_fallthru
      _
    // Predicated region
    $region30: #{tpu_custom_call.1} parent=1 // pred_check
      _
    $region31: #{tpu_custom_call.1} parent=1 // pred_check_branch
      %239 = sbr.rel (0) target = $region33
    $region32: #{tpu_custom_call.1} parent=1 // pred_region
      %240 = dma.done [#allocation4], 128
    $region33: #{tpu_custom_call.1} parent=1 // pred_fallthru
      _
    %241 = vsyncpa [#allocation3], 1
    %242 = vsyncpa [#allocation6], 1
    %243 = vsyncpa [#allocation4], 1

</llo_original>
